<compile_context>
chip_gen: v7x
topology: tpu7x:2x2x1
jax: 0.10.0
libtpu: 0.0.40
codegen_flags: <defaults>
</compile_context>

<pallas_src>
import functools

import jax
import jax.numpy as jnp
from jax.experimental import pallas as pl
from jax.experimental.pallas import tpu as pltpu

LN_EPS = 1e-5  # nn.LayerNorm default


def _vmem_capacity_bytes():
    try:
        return int(pltpu.get_tpu_info().vmem_capacity_bytes)
    except Exception:
        return 128 * 1024 * 1024  # v5e / v6e default


# ----------------------------------------------------------------------------
# Single-pass kernel: whole (b_blk, L, C_pad) block resident in VMEM
# ----------------------------------------------------------------------------
def _my_layernorm_kernel(x_ref, w_ref, b_ref, o_ref, *, inv_c, inv_l):
    # x_ref: (b_blk, L, C_pad); w_ref/b_ref: (1, 1, C_pad) f32 (zero-padded)
    x = x_ref[...].astype(jnp.float32)

    # LayerNorm stats over the channel dim.  Sums include zero-padded lanes,
    # so divide by the true channel count (inv_c = 1/C).
    mean = jnp.sum(x, axis=-1, keepdims=True) * inv_c
    mean_sq = jnp.sum(x * x, axis=-1, keepdims=True) * inv_c
    var = jnp.maximum(mean_sq - mean * mean, 0.0)   # clamp: one-pass var can cancel < 0
    inv_std = jax.lax.rsqrt(var + LN_EPS)

    w = w_ref[...]
    b = b_ref[...]
    # seq-mean of x_hat without materializing x_hat:
    #   mean_L(norm*w + b) = w * mean_L(norm) + b
    seq_mean = jnp.sum((x - mean) * inv_std, axis=1, keepdims=True) * inv_l * w + b
    # out = x_hat - seq_mean, fused elementwise (norm recomputed on the VPU;
    # free under the HBM roofline, saves a full-size f32 buffer).
    o_ref[...] = ((x - mean) * inv_std * w + b - seq_mean).astype(o_ref.dtype)


# ----------------------------------------------------------------------------
# Two-pass L-tiled fallback (single batch row too big for one block)
# ----------------------------------------------------------------------------
def _ln_pass1_kernel(x_ref, norm_ref, ssum_ref, *, inv_c, l_blk, seq_len):
    # x_ref/norm_ref: (1, l_blk, C_pad); ssum_ref: (1, 1, C_pad) accumulator
    li = pl.program_id(1)

    @pl.when(li == 0)
    def _():
        ssum_ref[...] = jnp.zeros_like(ssum_ref)

    x = x_ref[...].astype(jnp.float32)
    mean = jnp.sum(x, axis=-1, keepdims=True) * inv_c
    mean_sq = jnp.sum(x * x, axis=-1, keepdims=True) * inv_c
    var = jnp.maximum(mean_sq - mean * mean, 0.0)
    inv_std = jax.lax.rsqrt(var + LN_EPS)
    norm = (x - mean) * inv_std
    norm_ref[...] = norm.astype(norm_ref.dtype)

    # Mask rows beyond the true sequence length (partial trailing L block —
    # their contents are uninitialized) before accumulating the seq-sum.
    row = jax.lax.broadcasted_iota(jnp.int32, norm.shape, 1) + li * l_blk
    ssum_ref[...] += jnp.sum(jnp.where(row < seq_len, norm, 0.0),
                             axis=1, keepdims=True)


def _ln_pass2_kernel(norm_ref, ssum_ref, w_ref, b_ref, o_ref, *, inv_l):
    norm = norm_ref[...].astype(jnp.float32)
    w = w_ref[...]
    b = b_ref[...]
    seq_mean = ssum_ref[...] * inv_l * w + b
    o_ref[...] = (norm * w + b - seq_mean).astype(o_ref.dtype)


# ----------------------------------------------------------------------------
# Wrapper: my_Layernorm (the Encoder's norm_layer)
# ----------------------------------------------------------------------------
def my_layernorm(x, weight, bias, *,
                 max_block_elems=None,
                 vmem_limit_bytes=None,
                 target_grid=8,
                 pad_channels=True,
                 donate_x=False):
    """x: (B, L, C); weight, bias: (C,). Returns (B, L, C) in x.dtype."""
    B, L, C = x.shape

    cap = _vmem_capacity_bytes()
    if vmem_limit_bytes is None:
        # 32 MiB on v7x (64 MiB VMEM), 48 MiB on v5e/v6e (128 MiB VMEM).
        vmem_limit_bytes = min(cap // 2, 48 * 1024 * 1024)
    if max_block_elems is None:
        # ~1 MiB f32 input blocks on v7x, ~4 MiB on v5e/v6e; mem-bound tiling
        # already saturates HBM at these sizes, so bigger buys nothing.
        max_block_elems = (1 << 18) if cap <= 64 * 1024 * 1024 else (1 << 20)

    # --- lane-dense channel padding (avoid masked vst partial stores) -------
    C_pad = C
    if pad_channels and C % 128 != 0:
        C_pad = ((C + 127) // 128) * 128
    padded = C_pad != C
    # NOTE: padding trades one extra pad/slice copy for unmasked stores; real
    # FEDformer d_model (e.g. 512) needs no padding at all.
    x_in = jnp.pad(x, ((0, 0), (0, 0), (0, C_pad - C))) if padded else x
    w3 = jnp.pad(weight.astype(jnp.float32), (0, C_pad - C)).reshape(1, 1, C_pad)
    b3 = jnp.pad(bias.astype(jnp.float32), (0, C_pad - C)).reshape(1, 1, C_pad)

    inv_c = 1.0 / C   # true-channel mean even with zero-padded lanes
    inv_l = 1.0 / L
    per_batch = L * C_pad
    itemsize = jnp.dtype(x.dtype).itemsize

    # Aliasing the output onto the (padded temp or donated) input removes an
    # extra HBM allocation / copy around the custom call.
    alias = {0: 0} if (donate_x or padded) else {}

    if per_batch <= max_block_elems:
        # --------------------- single-pass, batch-folded ---------------------
        # Size for pipeline depth: prefer >= target_grid steps (and an even
        # count for v7x's 2 TCs), balanced blocks, still within VMEM budget.
        b_budget = min(B, max(1, max_block_elems // per_batch))
        grid_b = min(B, max(target_grid, pl.cdiv(B, b_budget)))
        if grid_b % 2 == 1 and grid_b < B:
            grid_b += 1
        b_blk = pl.cdiv(B, grid_b)
        grid_b = pl.cdiv(B, b_blk)

        kernel = functools.partial(_my_layernorm_kernel, inv_c=inv_c, inv_l=inv_l)
        cost = pl.CostEstimate(
            flops=12 * B * L * C,
            transcendentals=B * L,                      # rsqrt per (b, l) row
            bytes_accessed=2 * B * L * C * itemsize + 2 * C * 4,
        )
        out = pl.pallas_call(
            kernel,
            out_shape=jax.ShapeDtypeStruct((B, L, C_pad), x.dtype),
            grid_spec=pltpu.PrefetchScalarGridSpec(
                num_scalar_prefetch=0,
                grid=(grid_b,),
                in_specs=[
                    # L and C_pad are full-extent / lane-aligned, so the
                    # (8,128) constraint holds; partial trailing B is masked.
                    pl.BlockSpec((b_blk, L, C_pad), lambda b: (b, 0, 0)),
                    pl.BlockSpec((1, 1, C_pad), lambda b: (0, 0, 0)),
                    pl.BlockSpec((1, 1, C_pad), lambda b: (0, 0, 0)),
                ],
                out_specs=pl.BlockSpec((b_blk, L, C_pad), lambda b: (b, 0, 0)),
            ),
            compiler_params=pltpu.CompilerParams(
                dimension_semantics=("parallel",),
                vmem_limit_bytes=vmem_limit_bytes,
            ),
            cost_estimate=cost,
            input_output_aliases=alias,
        )(x_in, w3, b3)
    else:
        # ------------------ two-pass L-tiled fallback (big rows) -------------
        rows = max(1, max_block_elems // C_pad)
        l_blk = min(L, max(8, (rows // 8) * 8))   # multiple of 8 or full extent
        n_l = pl.cdiv(L, l_blk)

        p1 = functools.partial(_ln_pass1_kernel, inv_c=inv_c, l_blk=l_blk, seq_len=L)
        norm, ssum = pl.pallas_call(
            p1,
            out_shape=(jax.ShapeDtypeStruct((B, L, C_pad), x.dtype),
                       jax.ShapeDtypeStruct((B, 1, C_pad), jnp.float32)),
            grid_spec=pltpu.PrefetchScalarGridSpec(
                num_scalar_prefetch=0,
                grid=(B, n_l),
                in_specs=[pl.BlockSpec((1, l_blk, C_pad), lambda b, l: (b, l, 0))],
                out_specs=[
                    pl.BlockSpec((1, l_blk, C_pad), lambda b, l: (b, l, 0)),
                    # seq-sum accumulator: same block across the L axis
                    pl.BlockSpec((1, 1, C_pad), lambda b, l: (b, 0, 0)),
                ],
            ),
            compiler_params=pltpu.CompilerParams(
                dimension_semantics=("parallel", "arbitrary"),
                vmem_limit_bytes=vmem_limit_bytes,
            ),
            input_output_aliases=alias,
        )(x_in)

        p2 = functools.partial(_ln_pass2_kernel, inv_l=inv_l)
        out = pl.pallas_call(
            p2,
            out_shape=jax.ShapeDtypeStruct((B, L, C_pad), x.dtype),
            grid_spec=pltpu.PrefetchScalarGridSpec(
                num_scalar_prefetch=0,
                grid=(B, n_l),
                in_specs=[
                    pl.BlockSpec((1, l_blk, C_pad), lambda b, l: (b, l, 0)),
                    pl.BlockSpec((1, 1, C_pad), lambda b, l: (b, 0, 0)),
                    pl.BlockSpec((1, 1, C_pad), lambda b, l: (0, 0, 0)),
                    pl.BlockSpec((1, 1, C_pad), lambda b, l: (0, 0, 0)),
                ],
                out_specs=pl.BlockSpec((1, l_blk, C_pad), lambda b, l: (b, l, 0)),
            ),
            compiler_params=pltpu.CompilerParams(
                dimension_semantics=("parallel", "parallel"),
                vmem_limit_bytes=vmem_limit_bytes,
            ),
            input_output_aliases={0: 0},   # `norm` is an internal temp; reuse it
        )(norm, ssum, w3, b3)

    if padded:
        out = out[:, :, :C]
    return out


def my_layernorm_ref(x, weight, bias):
    """Pure-JAX reference matching the PyTorch my_Layernorm forward."""
    x32 = x.astype(jnp.float32)
    mean = jnp.mean(x32, axis=-1, keepdims=True)
    var = jnp.mean((x32 - mean) ** 2, axis=-1, keepdims=True)
    x_hat = (x32 - mean) / jnp.sqrt(var + LN_EPS)
    x_hat = x_hat * weight + bias
    seq_mean = jnp.mean(x_hat, axis=1, keepdims=True)
    return (x_hat - seq_mean).astype(x.dtype)


# ----------------------------------------------------------------------------
# Encoder forward (mirrors FEDformer Encoder.forward, conv_layers=None path)
# ----------------------------------------------------------------------------
def encoder_forward(x, attn_layers=(), norm_params=None, attn_mask=None):
    """attn_layers: sequence of callables (x, attn_mask=...) -> (x, attn).

    They correspond to the constructor-injected EncoderLayer modules
    (AutoCorrelation / FourierBlock etc.) and are applied as opaque JAX
    callables.  norm_params=(weight, bias) selects the Pallas my_Layernorm.
    """
    # TODO(synk): attn_layers / conv_layers internals are external sub-modules
    # of the Encoder constructor; they are not re-implemented as Pallas here.
    attns = []
    for layer in attn_layers:
        x, attn = layer(x, attn_mask=attn_mask)
        attns.append(attn)
    if norm_params is not None:
        w, b = norm_params
        x = my_layernorm(x, w, b)
    return x, attns


if __name__ == "__main__":
    key = jax.random.PRNGKey(0)
    kx, kw, kb = jax.random.split(key, 3)

    # Small FEDformer-like shapes: batch=2, seq=8, channels (d_model)=32.
    B, L, C = 2, 8, 32
    # Nonzero per-row mean exercises the clamped one-pass variance path.
    x = jax.random.normal(kx, (B, L, C), dtype=jnp.float32) + 3.0
    weight = 1.0 + 0.1 * jax.random.normal(kw, (C,), dtype=jnp.float32)
    bias = 0.1 * jax.random.normal(kb, (C,), dtype=jnp.float32)

    ref = my_layernorm_ref(x, weight, bias)

    out, attns = encoder_forward(x, attn_layers=(), norm_params=(weight, bias))
    out = jax.block_until_ready(out)
    assert out.shape == (B, L, C)
    assert jnp.allclose(out, ref, atol=1e-4, rtol=1e-4), "single-pass mismatch"

    # Exercise the L-tiled two-pass fallback (forced tiny block budget, with a
    # partial trailing L tile to hit the masking path).
    B2, L2, C2 = 2, 36, 32
    x2 = jax.random.normal(jax.random.PRNGKey(1), (B2, L2, C2), dtype=jnp.float32)
    out2 = jax.block_until_ready(my_layernorm(x2, weight, bias, max_block_elems=1024))
    ref2 = my_layernorm_ref(x2, weight, bias)
    assert out2.shape == (B2, L2, C2)
    assert jnp.allclose(out2, ref2, atol=1e-4, rtol=1e-4), "two-pass mismatch"

    print("KERNEL_OK")
</pallas_src>

<mosaic_0001>
module attributes {stable_mosaic.version = 11 : i64} {
  func.func @_my_layernorm_kernel(%arg0: i32, %arg1: memref<1x8x128xf32, #tpu.memory_space<vmem>>, %arg2: memref<1x1x128xf32, #tpu.memory_space<vmem>>, %arg3: memref<1x1x128xf32, #tpu.memory_space<vmem>>, %arg4: memref<1x8x128xf32, #tpu.memory_space<vmem>>) attributes {dimension_semantics = [#tpu.dimension_semantics<parallel>], iteration_bounds = array<i64: 2>, scalar_prefetch = 0 : i64, scratch_operands = 0 : i64, tpu.core_type = #tpu.core_type<tc>, window_params = [{transform_indices = @transform_0, window_bounds = array<i64: 1, 8, 128>}, {pipeline_mode = #tpu.pipeline_mode<synchronous>, transform_indices = @transform_1, window_bounds = array<i64: 1, 1, 128>}, {pipeline_mode = #tpu.pipeline_mode<synchronous>, transform_indices = @transform_2, window_bounds = array<i64: 1, 1, 128>}, {transform_indices = @transform_3, window_bounds = array<i64: 1, 8, 128>}]} {
    %c0 = arith.constant 0 : index
    %c0_0 = arith.constant 0 : index
    %c0_1 = arith.constant 0 : index
    %0 = vector.load %arg1[%c0, %c0_0, %c0_1] : memref<1x8x128xf32, #tpu.memory_space<vmem>>, vector<1x8x128xf32>
    %cst = arith.constant dense<0.000000e+00> : vector<1x8xf32>
    %1 = vector.multi_reduction <add>, %0, %cst [2] : vector<1x8x128xf32> to vector<1x8xf32>
    %2 = vector.shape_cast %1 : vector<1x8xf32> to vector<1x8x1xf32>
    %cst_2 = arith.constant 3.125000e-02 : f32
    %3 = vector.broadcast %cst_2 : f32 to vector<1x8x1xf32>
    %4 = arith.mulf %2, %3 : vector<1x8x1xf32>
    %5 = arith.mulf %0, %0 : vector<1x8x128xf32>
    %cst_3 = arith.constant dense<0.000000e+00> : vector<1x8xf32>
    %6 = vector.multi_reduction <add>, %5, %cst_3 [2] : vector<1x8x128xf32> to vector<1x8xf32>
    %7 = vector.shape_cast %6 : vector<1x8xf32> to vector<1x8x1xf32>
    %cst_4 = arith.constant 3.125000e-02 : f32
    %8 = vector.broadcast %cst_4 : f32 to vector<1x8x1xf32>
    %9 = arith.mulf %7, %8 : vector<1x8x1xf32>
    %10 = arith.mulf %4, %4 : vector<1x8x1xf32>
    %11 = arith.subf %9, %10 : vector<1x8x1xf32>
    %cst_5 = arith.constant 0.000000e+00 : f32
    %12 = vector.broadcast %cst_5 : f32 to vector<1x8x1xf32>
    %13 = arith.maximumf %11, %12 : vector<1x8x1xf32>
    %cst_6 = arith.constant 9.99999974E-6 : f32
    %14 = vector.broadcast %cst_6 : f32 to vector<1x8x1xf32>
    %15 = arith.addf %13, %14 : vector<1x8x1xf32>
    %16 = math.rsqrt %15 : vector<1x8x1xf32>
    %c0_7 = arith.constant 0 : index
    %c0_8 = arith.constant 0 : index
    %c0_9 = arith.constant 0 : index
    %17 = vector.load %arg2[%c0_7, %c0_8, %c0_9] : memref<1x1x128xf32, #tpu.memory_space<vmem>>, vector<1x1x128xf32>
    %c0_10 = arith.constant 0 : index
    %c0_11 = arith.constant 0 : index
    %c0_12 = arith.constant 0 : index
    %18 = vector.load %arg3[%c0_10, %c0_11, %c0_12] : memref<1x1x128xf32, #tpu.memory_space<vmem>>, vector<1x1x128xf32>
    %19 = vector.broadcast %4 : vector<1x8x1xf32> to vector<1x8x128xf32>
    %20 = arith.subf %0, %19 : vector<1x8x128xf32>
    %21 = vector.broadcast %16 : vector<1x8x1xf32> to vector<1x8x128xf32>
    %22 = arith.mulf %20, %21 : vector<1x8x128xf32>
    %cst_13 = arith.constant dense<0.000000e+00> : vector<1x128xf32>
    %23 = vector.multi_reduction <add>, %22, %cst_13 [1] : vector<1x8x128xf32> to vector<1x128xf32>
    %24 = vector.shape_cast %23 : vector<1x128xf32> to vector<1x1x128xf32>
    %cst_14 = arith.constant 1.250000e-01 : f32
    %25 = vector.broadcast %cst_14 : f32 to vector<1x1x128xf32>
    %26 = arith.mulf %24, %25 : vector<1x1x128xf32>
    %27 = arith.mulf %26, %17 : vector<1x1x128xf32>
    %28 = arith.addf %27, %18 : vector<1x1x128xf32>
    %29 = vector.broadcast %4 : vector<1x8x1xf32> to vector<1x8x128xf32>
    %30 = arith.subf %0, %29 : vector<1x8x128xf32>
    %31 = vector.broadcast %16 : vector<1x8x1xf32> to vector<1x8x128xf32>
    %32 = arith.mulf %30, %31 : vector<1x8x128xf32>
    %33 = vector.broadcast %17 : vector<1x1x128xf32> to vector<1x8x128xf32>
    %34 = arith.mulf %32, %33 : vector<1x8x128xf32>
    %35 = vector.broadcast %18 : vector<1x1x128xf32> to vector<1x8x128xf32>
    %36 = arith.addf %34, %35 : vector<1x8x128xf32>
    %37 = vector.broadcast %28 : vector<1x1x128xf32> to vector<1x8x128xf32>
    %38 = arith.subf %36, %37 : vector<1x8x128xf32>
    %c0_15 = arith.constant 0 : index
    %c0_16 = arith.constant 0 : index
    %c0_17 = arith.constant 0 : index
    %39 = vector.load %arg4[%c0_15, %c0_16, %c0_17] : memref<1x8x128xf32, #tpu.memory_space<vmem>>, vector<1x8x128xf32>
    tpu.vector_store %arg4[%c0_15, %c0_16, %c0_17], %38 {strides = array<i32>} : memref<1x8x128xf32, #tpu.memory_space<vmem>>, vector<1x8x128xf32>,
    return
  }
  func.func @transform_0(%arg0: i32) -> (i32, i32, i32) {
    %c0_i32 = arith.constant 0 : i32
    %c0_i32_0 = arith.constant 0 : i32
    %c0_i32_1 = arith.constant 0 : i32
    return %arg0, %c0_i32, %c0_i32_0 : i32, i32, i32
  }
  func.func @transform_1(%arg0: i32) -> (i32, i32, i32) {
    %c0_i32 = arith.constant 0 : i32
    %c0_i32_0 = arith.constant 0 : i32
    %c0_i32_1 = arith.constant 0 : i32
    %c0_i32_2 = arith.constant 0 : i32
    return %c0_i32, %c0_i32_0, %c0_i32_1 : i32, i32, i32
  }
  func.func @transform_2(%arg0: i32) -> (i32, i32, i32) {
    %c0_i32 = arith.constant 0 : i32
    %c0_i32_0 = arith.constant 0 : i32
    %c0_i32_1 = arith.constant 0 : i32
    %c0_i32_2 = arith.constant 0 : i32
    return %c0_i32, %c0_i32_0, %c0_i32_1 : i32, i32, i32
  }
  func.func @transform_3(%arg0: i32) -> (i32, i32, i32) {
    %c0_i32 = arith.constant 0 : i32
    %c0_i32_0 = arith.constant 0 : i32
    %c0_i32_1 = arith.constant 0 : i32
    return %arg0, %c0_i32, %c0_i32_0 : i32, i32, i32
  }
}

</mosaic_0001>

<llo_original>
// kernel: tpu_custom_call.1
$region0: #{tpu_custom_call.1}
  #allocation0 [shape = 'u32[]', space=smem, size = 0x4, offset = 0x4, fixed_abs, tag = 'smem constant byte address 0x4 - core index']
  #allocation1 [shape = 'u32[144,128]{1,0:T(1,128)}', space=vmem, size = 0x12000, scoped, tag = 'internal scratch']
  %s0 = inlined_call_operand.hbm [shape: f32[2,8,128], index: 0, kind: input, shape index: {}, may-alias: {0,3}]
  %s1 = inlined_call_operand.vmem [shape: f32[1,1,128], index: 1, kind: input, shape index: {}]
  %s2 = inlined_call_operand.vmem [shape: f32[1,1,128], index: 2, kind: input, shape index: {}]
  %s3 = inlined_call_operand.hbm [shape: f32[2,8,128], index: 3, kind: output, shape index: {}, may-alias: {0,3}]
  %s4 = sld [smem:[#allocation0]]
  $region49: #{tpu_custom_call.1} parent=0
    _
  %s6 = ssub.s32 1, %s4
  %s7 = scalar_select 0, %s6, %s4
  $region1: #{tpu_custom_call.1} parent=0
    #allocation2 [shape = 'u8[8192]{0}', space=vmem, size = 0x2000, scoped, tag = 'input window, operand 0']
    #allocation3 [shape = 's32[2]{0}', space=sflag, size = 0x8, scoped, tag = 'scoped memory for tpu_custom_call.1']
    #allocation4 [shape = 's32[2]{0}', space=sflag, size = 0x8, scoped, tag = 'scoped memory for tpu_custom_call.1']
    #allocation5 [shape = 'u8[8192]{0}', space=vmem, size = 0x2000, scoped, tag = 'output window, operand 0']
    %8 = vsyncpa [#allocation3], 0
    %s9 = scalar_lea.sflag [#allocation3], 1
    %10 = vsyncpa %s9, 0
    %11 = vsyncpa [#allocation4], 0
    %s12 = scalar_lea.sflag [#allocation4], 1
    %13 = vsyncpa %s12, 0
    loop: start=0, step=1, limit=4
    $region2: #{tpu_custom_call.1} parent=1 // loop_pre_header
      _
    $region3: #{tpu_custom_call.1} parent=1 // loop_header
      %s15 = sphi 0, %s19
      %p16 = scmp.ge.s32.totalorder %s15, 4
      %s25 = sphi 0, %s27
      %s28 = sphi 0, %s25
      %s29 = sphi 0, %s28
      %s45 = sphi 0, %s29
      %s49 = sphi 0, %s49
      %s51 = sphi 0, %s49
      %s52 = sphi 0, %s51
      %s66 = sphi 0, %s52
      %s70 = sphi 0, %s70
      %s72 = sphi 0, %s70
      %s73 = sphi 0, %s72
      %s87 = sphi 0, %s73
      %s93 = sphi 0, %s95
      %s96 = sphi 0, %s93
      %s97 = sphi 0, %s96
      %s113 = sphi 0, %s97
    $region4: #{tpu_custom_call.1} parent=1 // loop_header_branch
      %18 = sbr.rel (%p16) target = $region8
    $region5: #{tpu_custom_call.1} parent=1 // loop_body
      %s20 = ssub.s32 %s15, 1
      %s21 = ssub.s32 %s15, 2
      %s22 = sadd.s32 %s15, 1
      %s23 = ssub.s32 %s15, %s22
      %p24 = scmp.eq.s32.totalorder %s23, 0
      %s26 = sadd.s32 %s25, 1
      %s27 = scalar_select %p24, %s25, %s26
      %p30 = pneg %p24
      %p31 = scmp.eq.s32.totalorder %s15, 1
      %p32 = por %p30, %p31
      %p33 = scmp.ne.s32.totalorder %s25, %s28
      %p34 = scmp.eq.s32.totalorder %s15, 0
      %p35 = por %p33, %p34
      %p36 = scmp.ne.s32.totalorder %s25, %s28
      %p37 = scmp.eq.s32.totalorder %s20, 1
      %p38 = por %p36, %p37
      %p39 = scmp.ne.s32.totalorder %s28, %s29
      %p40 = scmp.eq.s32.totalorder %s20, 0
      %p41 = por %p39, %p40
      %p42 = scmp.ne.s32.totalorder %s28, %s29
      %p43 = scmp.eq.s32.totalorder %s21, 1
      %p44 = por %p42, %p43
      %p46 = scmp.ne.s32.totalorder %s29, %s45
      %p47 = scmp.eq.s32.totalorder %s21, 0
      %p48 = por %p46, %p47
      %s50 = sadd.s32 %s49, 1
      %p53 = scmp.eq.s32.totalorder %s15, 1
      %p54 = scmp.ne.s32.totalorder %s49, %s51
      %p55 = scmp.eq.s32.totalorder %s15, 0
      %p56 = por %p54, %p55
      %p57 = scmp.ne.s32.totalorder %s49, %s51
      %p58 = scmp.eq.s32.totalorder %s20, 1
      %p59 = por %p57, %p58
      %p60 = scmp.ne.s32.totalorder %s51, %s52
      %p61 = scmp.eq.s32.totalorder %s20, 0
      %p62 = por %p60, %p61
      %p63 = scmp.ne.s32.totalorder %s51, %s52
      %p64 = scmp.eq.s32.totalorder %s21, 1
      %p65 = por %p63, %p64
      %p67 = scmp.ne.s32.totalorder %s52, %s66
      %p68 = scmp.eq.s32.totalorder %s21, 0
      %p69 = por %p67, %p68
      %s71 = sadd.s32 %s70, 1
      %p74 = scmp.eq.s32.totalorder %s15, 1
      %p75 = scmp.ne.s32.totalorder %s70, %s72
      %p76 = scmp.eq.s32.totalorder %s15, 0
      %p77 = por %p75, %p76
      %p78 = scmp.ne.s32.totalorder %s70, %s72
      %p79 = scmp.eq.s32.totalorder %s20, 1
      %p80 = por %p78, %p79
      %p81 = scmp.ne.s32.totalorder %s72, %s73
      %p82 = scmp.eq.s32.totalorder %s20, 0
      %p83 = por %p81, %p82
      %p84 = scmp.ne.s32.totalorder %s72, %s73
      %p85 = scmp.eq.s32.totalorder %s21, 1
      %p86 = por %p84, %p85
      %p88 = scmp.ne.s32.totalorder %s73, %s87
      %p89 = scmp.eq.s32.totalorder %s21, 0
      %p90 = por %p88, %p89
      %s91 = ssub.s32 %s15, %s22
      %p92 = scmp.eq.s32.totalorder %s91, 0
      %s94 = sadd.s32 %s93, 1
      %s95 = scalar_select %p92, %s93, %s94
      %p98 = pneg %p92
      %p99 = scmp.eq.s32.totalorder %s15, 1
      %p100 = por %p98, %p99
      %p101 = scmp.ne.s32.totalorder %s93, %s96
      %p102 = scmp.eq.s32.totalorder %s15, 0
      %p103 = por %p101, %p102
      %p104 = scmp.ne.s32.totalorder %s93, %s96
      %p105 = scmp.eq.s32.totalorder %s20, 1
      %p106 = por %p104, %p105
      %p107 = scmp.ne.s32.totalorder %s96, %s97
      %p108 = scmp.eq.s32.totalorder %s20, 0
      %p109 = por %p107, %p108
      %p110 = scmp.ne.s32.totalorder %s96, %s97
      %p111 = scmp.eq.s32.totalorder %s21, 1
      %p112 = por %p110, %p111
      %p114 = scmp.ne.s32.totalorder %s97, %s113
      %p115 = scmp.eq.s32.totalorder %s21, 0
      %p116 = por %p114, %p115
      %p117 = scmp.le.s32.totalorder 1, %s15
      %p118 = scmp.lt.s32.totalorder %s15, 3
      %p119 = pnand %p117, %p118
      %p120 = pneg %p119
      // Predicated region
      $region9: #{tpu_custom_call.1} parent=5 // pred_check
        _
      $region10: #{tpu_custom_call.1} parent=5 // pred_check_branch
        %122 = sbr.rel (%p119) target = $region12
      $region11: #{tpu_custom_call.1} parent=5 // pred_region
        %s123 = ssub.s32 %s15, 1
        // Predicated region
        $region13: #{tpu_custom_call.1} parent=11 // pred_check
          %p124 = pneg %p62
        $region14: #{tpu_custom_call.1} parent=11 // pred_check_branch
          %126 = sbr.rel (%p124) target = $region16
        $region15: #{tpu_custom_call.1} parent=11 // pred_region
          _
        $region16: #{tpu_custom_call.1} parent=11 // pred_fallthru
          _
        // Predicated region
        $region17: #{tpu_custom_call.1} parent=11 // pred_check
          %p127 = pneg %p83
        $region18: #{tpu_custom_call.1} parent=11 // pred_check_branch
          %129 = sbr.rel (%p127) target = $region20
        $region19: #{tpu_custom_call.1} parent=11 // pred_region
          _
        $region20: #{tpu_custom_call.1} parent=11 // pred_fallthru
          _
      $region12: #{tpu_custom_call.1} parent=5 // pred_fallthru
        _
      %p130 = scmp.lt.s32.totalorder %s15, 2
      // Predicated region
      $region21: #{tpu_custom_call.1} parent=5 // pred_check
        %p131 = pneg %p130
      $region22: #{tpu_custom_call.1} parent=5 // pred_check_branch
        %133 = sbr.rel (%p131) target = $region24
      $region23: #{tpu_custom_call.1} parent=5 // pred_region
        // Predicated region
        $region25: #{tpu_custom_call.1} parent=23 // pred_check
          %p134 = pneg %p35
        $region26: #{tpu_custom_call.1} parent=23 // pred_check_branch
          %136 = sbr.rel (%p134) target = $region28
        $region27: #{tpu_custom_call.1} parent=23 // pred_region
          %s137 = sand.u32 %s25, 1
          %s138 = scalar_lea.sflag [#allocation3], %s137
          %s139 = sand.u32 %s25, 1
          %s140 = smul.addr %s139, 8
          %s141 = scalar_lea.vmem [#allocation2], %s140
          %s143 = ssub.s32 128, 128
          %144 = vsyncadd %s138, %s143
          %s145 = smul.addr %s15, 128
          %s146 = scalar_lea.hbm %s0, %s145
          %s148 = sshll.u32 %s141, 4
          %s149 = int_to_ptr.vmem [resolvable:$true] %s148
          %151 = dma.hbm_to_vmem [thread:$0]  %s146, 128, %s149, %s138
        $region28: #{tpu_custom_call.1} parent=23 // pred_fallthru
          _
      $region24: #{tpu_custom_call.1} parent=5 // pred_fallthru
        _
      %p152 = scmp.le.s32.totalorder 1, %s15
      %p153 = scmp.lt.s32.totalorder %s15, 3
      %p154 = pnand %p152, %p153
      %p155 = pneg %p154
      // Predicated region
      $region29: #{tpu_custom_call.1} parent=5 // pred_check
        _
      $region30: #{tpu_custom_call.1} parent=5 // pred_check_branch
        %157 = sbr.rel (%p154) target = $region32
      $region31: #{tpu_custom_call.1} parent=5 // pred_region
        %s158 = ssub.s32 %s15, 1
        %s159 = sand.u32 %s28, 1
        %s160 = scalar_lea.sflag [#allocation3], %s159
        %s161 = sand.u32 %s28, 1
        %s162 = smul.addr %s161, 8
        %s163 = scalar_lea.vmem [#allocation2], %s162
        // Predicated region
        $region33: #{tpu_custom_call.1} parent=31 // pred_check
          %p164 = pneg %p41
        $region34: #{tpu_custom_call.1} parent=31 // pred_check_branch
          %166 = sbr.rel (%p164) target = $region36
        $region35: #{tpu_custom_call.1} parent=31 // pred_region
          %167 = dma.done %s160, 128
        $region36: #{tpu_custom_call.1} parent=31 // pred_fallthru
          _
        %s168 = sand.u32 %s28, 1
        %s169 = scalar_lea.sflag [#allocation3], %s168
        %s170 = sand.u32 %s28, 1
        %s171 = smul.addr %s170, 8
        %s172 = scalar_lea.vmem [#allocation2], %s171
        %p173 = pneg %p41
        %p174 = pneg %p38
        %p175 = pneg %p62
        %p176 = pneg %p59
        %p177 = pneg %p83
        %p178 = pneg %p80
        %p179 = pneg %p109
        %p180 = pneg %p106
        %s181 = sand.u32 %s96, 1
        %s182 = scalar_lea.sflag [#allocation4], %s181
        %s183 = sand.u32 %s96, 1
        %s184 = smul.addr %s183, 8
        %s185 = scalar_lea.vmem [#allocation5], %s184
        %v186 = vld [vmem:[%s163] sm:$0xff]
        %187 = vadd.xlane.f32.xlu0 %v186
        %v188 = vpop.xlane.xlu0 %187
        %v189 = vmul.f32 %v188, 0.03125
        %v190 = vmul.f32 %v186, %v186
        %191 = vadd.xlane.f32.xlu0 %v190
        %v192 = vpop.xlane.xlu0 %191
        %v193 = vmul.f32 %v192, 0.03125
        %v194 = vmul.f32 %v189, %v189
        %v195 = vsub.f32 %v193, %v194
        %v196 = vmax.f32 %v195, 0.0
        %v197 = vadd.f32 %v196, 1e-05
        %v198 = vrsqrt.pop %v197
        %v199 = vld [vmem:[%s1] sm:$0x1]
        %v200 = vld [vmem:[%s2] sm:$0x1]
        %v201 = vsub.f32 %v186, %v189
        %v202 = vmul.f32 %v201, %v198
        %v203 = vrot.slane %v202, 4
        %v204 = vadd.f32 %v202, %v203
        %v205 = vrot.slane %v204, 2
        %v206 = vadd.f32 %v204, %v205
        %v207 = vrot.slane %v206, 1
        %v208 = vadd.f32 %v206, %v207
        %v209 = vmul.f32 %v208, 0.125
        %v210 = vmul.f32 %v209, %v199
        %v211 = vadd.f32 %v210, %v200
        %v213 = vlaneseq
        %v214 = vshrl.u32 %v213, 7
        %v215 = vsub.s32 0, %v214
        %v216 = vrot.slane %v199, %v215
        %v218 = vmul.f32 %v202, %v216
        %v220 = vlaneseq
        %v221 = vshrl.u32 %v220, 7
        %v222 = vsub.s32 0, %v221
        %v223 = vrot.slane %v200, %v222
        %v225 = vadd.f32 %v218, %v223
        %v226 = vlaneseq
        %v227 = vshrl.u32 %v226, 7
        %v228 = vsub.s32 0, %v227
        %v229 = vrot.slane %v211, %v228
        %v230 = vsub.f32 %v225, %v229
        %231 = vst [vmem:[%s185] sm:$0xff] %v230
        %s232 = sand.u32 %s96, 1
        %s233 = scalar_lea.sflag [#allocation4], %s232
        %s234 = sand.u32 %s96, 1
        %s235 = smul.addr %s234, 8
        %s236 = scalar_lea.vmem [#allocation5], %s235
        // Predicated region
        $region37: #{tpu_custom_call.1} parent=31 // pred_check
          %p237 = pneg %p106
        $region38: #{tpu_custom_call.1} parent=31 // pred_check_branch
          %239 = sbr.rel (%p237) target = $region40
        $region39: #{tpu_custom_call.1} parent=31 // pred_region
          %s241 = ssub.s32 128, 128
          %242 = vsyncadd %s233, %s241
          %s243 = smul.addr %s20, 128
          %s244 = scalar_lea.hbm %s3, %s243
          %s246 = sshll.u32 %s236, 4
          %s247 = int_to_ptr.vmem [resolvable:$true] %s246
          %249 = dma.vmem_to_hbm [thread:$0]  %s247, 128, %s244, %s233
        $region40: #{tpu_custom_call.1} parent=31 // pred_fallthru
          _
      $region32: #{tpu_custom_call.1} parent=5 // pred_fallthru
        _
      %p250 = scmp.le.s32.totalorder 2, %s15
      // Predicated region
      $region41: #{tpu_custom_call.1} parent=5 // pred_check
        %p251 = pneg %p250
      $region42: #{tpu_custom_call.1} parent=5 // pred_check_branch
        %253 = sbr.rel (%p251) target = $region44
      $region43: #{tpu_custom_call.1} parent=5 // pred_region
        %s254 = ssub.s32 %s15, 2
        // Predicated region
        $region45: #{tpu_custom_call.1} parent=43 // pred_check
          %p255 = pneg %p112
        $region46: #{tpu_custom_call.1} parent=43 // pred_check_branch
          %257 = sbr.rel (%p255) target = $region48
        $region47: #{tpu_custom_call.1} parent=43 // pred_region
          %s258 = sand.u32 %s97, 1
          %s259 = scalar_lea.sflag [#allocation4], %s258
          %s260 = sand.u32 %s97, 1
          %s261 = smul.addr %s260, 8
          %s262 = scalar_lea.vmem [#allocation5], %s261
          %263 = dma.done %s259, 128
        $region48: #{tpu_custom_call.1} parent=43 // pred_fallthru
          _
      $region44: #{tpu_custom_call.1} parent=5 // pred_fallthru
        _
    $region6: #{tpu_custom_call.1} parent=1 // loop_footer
      %s19 = sadd.s32 1, %s15
    $region7: #{tpu_custom_call.1} parent=1 // loop_footer_branch
      %14 = sbr.rel target = $region3
    $region8: #{tpu_custom_call.1} parent=1 // loop_exit
      _
    %264 = vsyncpa [#allocation3], 1
    %s265 = scalar_lea.sflag [#allocation3], 1
    %266 = vsyncpa %s265, 1
    %267 = vsyncpa [#allocation4], 1
    %s268 = scalar_lea.sflag [#allocation4], 1
    %269 = vsyncpa %s268, 1

</llo_original>
